<compile_context>
chip_gen: v5e
topology: v5e:2x2
jax: 0.10.0
libtpu: 0.0.40
codegen_flags: <defaults>
</compile_context>

<pallas_src>
import functools

import jax
import jax.numpy as jnp
from jax.experimental import pallas as pl
from jax.experimental.pallas import tpu as pltpu

EPS = 1e-5
MOMENTUM = 0.9


# --------------------------------------------------------------------------
# Hardware-aware configuration helpers
# --------------------------------------------------------------------------

def _vmem_budget():
    """Return (tile_budget_bytes, vmem_limit_bytes), generation aware."""
    try:
        cap = pltpu.get_tpu_info().vmem_capacity_bytes
    except Exception:
        cap = None
    if cap is not None and cap >= (128 << 20):
        # v5e / v6e: 128 MiB physical VMEM -> bigger tiles amortize the
        # ~0.35us per-step overhead.
        return 36 << 20, 96 << 20
    # v7x (64 MiB physical) or unknown chip: stay conservative.
    return 16 << 20, 40 << 20


def _normalize_dtype(x_dtype):
    """dtype for the elementwise normalize pass.

    Packed bf16 on v6e/v7x (2x elements per vreg op); f32 everywhere else
    (v5e has no bf16 VPU) and for f32 inputs.
    """
    if jnp.dtype(x_dtype) != jnp.dtype(jnp.bfloat16):
        return jnp.float32
    try:
        kind = jax.devices()[0].device_kind.lower()
    except Exception:
        kind = ""
    if any(tag in kind for tag in ("v2", "v3", "v4", "v5")):
        return jnp.float32
    return jnp.bfloat16


def _channel_tile_candidates(C):
    """Legal channel tiles: multiples of 8 dividing C, plus C itself."""
    return [C] + [tc for tc in range(8, C, 8) if C % tc == 0]


def _lane_tile_candidates(L):
    """Legal lane-axis tiles: multiples of 128 dividing L, plus L itself."""
    return [L] + [t for t in range(128, L, 128) if L % t == 0]


def _pick_channel_tile(C, per_channel_bytes, budget_bytes, min_blocks=4):
    """Largest legal channel tile under budget, preferring >= min_blocks blocks.

    Returns None when no legal tile fits (caller uses the two-pass fallback).
    """
    cands = _channel_tile_candidates(C)
    fitting = [tc for tc in cands if tc * per_channel_bytes <= budget_bytes]
    if not fitting:
        return None
    pref = [tc for tc in fitting if C // tc >= min_blocks]
    return max(pref) if pref else max(fitting)


def _pick_c_hw_tiles(N, C, HW, bytes_per_elem, budget_bytes):
    """(tc, thw) tiles for the bounded-VMEM two-pass path."""
    best = None
    for tc in _channel_tile_candidates(C):
        for thw in _lane_tile_candidates(HW):
            need = N * tc * thw * bytes_per_elem
            if need <= budget_bytes and (
                    best is None or tc * thw > best[0] * best[1]):
                best = (tc, thw)
    if best is None:
        # TODO(synk): extreme shapes (huge HW not divisible by 128) may still
        # exceed the budget; use the smallest legal tile anyway.
        best = (min(_channel_tile_candidates(C)),
                min(_lane_tile_candidates(HW)))
    return best


# --------------------------------------------------------------------------
# Kernels
# --------------------------------------------------------------------------

def _bn_fused_kernel(x_ref, gamma_ref, beta_ref, y_ref, stats_ref,
                     *, inv_n, norm_dtype):
    """Single-pass train BN: self-contained per-channel-block reduction.

    x_ref/y_ref: (N, tc, H*W); gamma/beta: (1, tc, 1); stats: (2, tc, 1).
    """
    x = x_ref[...]
    xf = x.astype(jnp.float32)                      # no-op for f32 inputs
    s1 = jnp.sum(xf, axis=(0, 2), keepdims=True)    # (1, tc, 1) f32
    s2 = jnp.sum(xf * xf, axis=(0, 2), keepdims=True)

    mean = s1 * inv_n
    var = jnp.maximum(s2 * inv_n - mean * mean, 0.0)  # clamp: cancellation
    inv_std = jax.lax.rsqrt(var + EPS)

    scale = gamma_ref[...].astype(jnp.float32) * inv_std
    shift = beta_ref[...].astype(jnp.float32) - scale * mean

    # y = gamma*(x-mean)*rsqrt(var+eps) + beta == x*scale + shift
    y_ref[...] = (x.astype(norm_dtype) * scale.astype(norm_dtype)
                  + shift.astype(norm_dtype)).astype(y_ref.dtype)

    stats_ref[...] = jnp.concatenate([mean, var], axis=0)


def _bn_stats_kernel(x_ref, stats_ref, *, inv_n):
    """Fallback pass 1: accumulate sum / sum-of-squares across HW blocks.

    Grid: (C blocks, HW blocks); stats output block (2, tc, 1) is resident
    across the (arbitrary) HW axis and finalized on the last HW step.
    """
    h = pl.program_id(1)

    @pl.when(h == 0)
    def _():
        stats_ref[...] = jnp.zeros_like(stats_ref)

    xf = x_ref[...].astype(jnp.float32)
    s1 = jnp.sum(xf, axis=(0, 2), keepdims=True)
    s2 = jnp.sum(xf * xf, axis=(0, 2), keepdims=True)
    stats_ref[...] += jnp.concatenate([s1, s2], axis=0)

    @pl.when(h == pl.num_programs(1) - 1)
    def _():
        s = stats_ref[...]
        mean = s[0:1] * inv_n
        var = jnp.maximum(s[1:2] * inv_n - mean * mean, 0.0)
        stats_ref[...] = jnp.concatenate([mean, var], axis=0)


def _bn_norm_kernel(x_ref, gamma_ref, beta_ref, stats_ref, y_ref,
                    *, norm_dtype):
    """Fallback pass 2: apply y = x*scale + shift using precomputed stats."""
    s = stats_ref[...].astype(jnp.float32)
    mean, var = s[0:1], s[1:2]
    inv_std = jax.lax.rsqrt(var + EPS)
    scale = gamma_ref[...].astype(jnp.float32) * inv_std
    shift = beta_ref[...].astype(jnp.float32) - scale * mean
    x = x_ref[...]
    y_ref[...] = (x.astype(norm_dtype) * scale.astype(norm_dtype)
                  + shift.astype(norm_dtype)).astype(y_ref.dtype)


def _bn_train_2d_kernel(x_ref, gamma_ref, beta_ref, y_ref, stats_ref,
                        *, inv_n, norm_dtype):
    """Fully-connected (num_dims == 2) train BN; features on the lane axis."""
    x = x_ref[...]                                   # (N, tcc)
    xf = x.astype(jnp.float32)
    s1 = jnp.sum(xf, axis=0, keepdims=True)          # (1, tcc)
    s2 = jnp.sum(xf * xf, axis=0, keepdims=True)
    mean = s1 * inv_n
    var = jnp.maximum(s2 * inv_n - mean * mean, 0.0)
    inv_std = jax.lax.rsqrt(var + EPS)
    scale = gamma_ref[...].astype(jnp.float32) * inv_std
    shift = beta_ref[...].astype(jnp.float32) - scale * mean
    y_ref[...] = (x.astype(norm_dtype) * scale.astype(norm_dtype)
                  + shift.astype(norm_dtype)).astype(y_ref.dtype)
    stats_ref[...] = jnp.concatenate([mean, var], axis=0)


# --------------------------------------------------------------------------
# pallas_call wrappers
# --------------------------------------------------------------------------

def _bn_train_4d_fused(x3d, g, b, tc, vmem_limit, norm_dtype):
    N, C, HW = x3d.shape
    inv_n = 1.0 / float(N * HW)
    isz = jnp.dtype(x3d.dtype).itemsize

    x_spec = pl.BlockSpec((N, tc, HW), lambda c: (0, c, 0))
    p_spec = pl.BlockSpec((1, tc, 1), lambda c: (0, c, 0))
    s_spec = pl.BlockSpec((2, tc, 1), lambda c: (0, c, 0))

    y3d, stats = pl.pallas_call(
        functools.partial(_bn_fused_kernel, inv_n=inv_n, norm_dtype=norm_dtype),
        grid=(C // tc,),
        in_specs=[x_spec, p_spec, p_spec],
        out_specs=(x_spec, s_spec),
        out_shape=(
            jax.ShapeDtypeStruct((N, C, HW), x3d.dtype),
            jax.ShapeDtypeStruct((2, C, 1), jnp.float32),
        ),
        compiler_params=pltpu.CompilerParams(
            dimension_semantics=("parallel",),
            vmem_limit_bytes=vmem_limit,
        ),
        cost_estimate=pl.CostEstimate(
            flops=6 * N * C * HW,
            transcendentals=C,
            bytes_accessed=2 * N * C * HW * isz + 16 * C,
        ),
    )(x3d, g, b)
    return y3d, stats


def _bn_stats_tiled(x3d, tc, thw, vmem_limit):
    N, C, HW = x3d.shape
    inv_n = 1.0 / float(N * HW)
    isz = jnp.dtype(x3d.dtype).itemsize
    stats = pl.pallas_call(
        functools.partial(_bn_stats_kernel, inv_n=inv_n),
        grid=(C // tc, HW // thw),
        in_specs=[pl.BlockSpec((N, tc, thw), lambda c, h: (0, c, h))],
        out_specs=pl.BlockSpec((2, tc, 1), lambda c, h: (0, c, 0)),
        out_shape=jax.ShapeDtypeStruct((2, C, 1), jnp.float32),
        compiler_params=pltpu.CompilerParams(
            dimension_semantics=("parallel", "arbitrary"),
            vmem_limit_bytes=vmem_limit,
        ),
        cost_estimate=pl.CostEstimate(
            flops=3 * N * C * HW,
            transcendentals=0,
            bytes_accessed=N * C * HW * isz + 8 * C,
        ),
    )(x3d)
    return stats


def _bn_normalize_tiled(x3d, g, b, stats, tc, thw, vmem_limit, norm_dtype):
    N, C, HW = x3d.shape
    isz = jnp.dtype(x3d.dtype).itemsize
    y3d = pl.pallas_call(
        functools.partial(_bn_norm_kernel, norm_dtype=norm_dtype),
        grid=(C // tc, HW // thw),
        in_specs=[
            pl.BlockSpec((N, tc, thw), lambda c, h: (0, c, h)),
            pl.BlockSpec((1, tc, 1), lambda c, h: (0, c, 0)),
            pl.BlockSpec((1, tc, 1), lambda c, h: (0, c, 0)),
            pl.BlockSpec((2, tc, 1), lambda c, h: (0, c, 0)),
        ],
        out_specs=pl.BlockSpec((N, tc, thw), lambda c, h: (0, c, h)),
        out_shape=jax.ShapeDtypeStruct((N, C, HW), x3d.dtype),
        compiler_params=pltpu.CompilerParams(
            dimension_semantics=("parallel", "parallel"),
            vmem_limit_bytes=vmem_limit,
        ),
        cost_estimate=pl.CostEstimate(
            flops=2 * N * C * HW,
            transcendentals=C,
            bytes_accessed=2 * N * C * HW * isz + 16 * C,
        ),
    )(x3d, g, b, stats)
    return y3d


def batch_norm_pallas_4d(x_nchw, gamma, beta, moving_mean, moving_var,
                         *, tile_budget_bytes=None):
    """Training-mode BatchNorm forward for 4-D (NCHW) inputs.

    Returns (Y, new_moving_mean, new_moving_var), shapes matching the inputs.
    """
    N, C, H, W = x_nchw.shape
    HW = H * W

    # Free reshapes only (trailing-dim merges / per-channel views).
    x3d = x_nchw.reshape(N, C, HW)
    g = gamma.reshape(1, C, 1)
    b = beta.reshape(1, C, 1)

    isz = jnp.dtype(x_nchw.dtype).itemsize
    budget, vmem_limit = _vmem_budget()
    if tile_budget_bytes is not None:
        budget = tile_budget_bytes
    norm_dtype = _normalize_dtype(x_nchw.dtype)

    # Double-buffered x-in + y-out tiles (2*2*isz bytes/elem) plus ~4 B/elem
    # of transient f32 working values for the one-pass sum-of-squares.
    bytes_per_elem = 4 * isz + 4
    per_channel_bytes = N * HW * bytes_per_elem
    tc = _pick_channel_tile(C, per_channel_bytes, budget, min_blocks=4)

    if tc is not None:
        # Fast path: self-contained reduction per channel block, single HBM
        # read and write of x.
        y3d, stats = _bn_train_4d_fused(x3d, g, b, tc, vmem_limit, norm_dtype)
    else:
        # Bounded-VMEM fallback (C not tileable under budget): stats pass with
        # an HW reduction grid axis + accumulator output, then normalize pass.
        tc_fb, thw = _pick_c_hw_tiles(N, C, HW, bytes_per_elem, budget)
        stats = _bn_stats_tiled(x3d, tc_fb, thw, vmem_limit)
        y3d = _bn_normalize_tiled(x3d, g, b, stats, tc_fb, thw,
                                  vmem_limit, norm_dtype)

    mean = stats[0].reshape(1, C, 1, 1)
    var = stats[1].reshape(1, C, 1, 1)
    # EMA update lives in the wrapper (keeps tiny sub-lane tensors out of the
    # kernel's per-step DMAs).  Matches the reference module's convention.
    new_mm = MOMENTUM * moving_mean + (1.0 - MOMENTUM) * mean
    new_mv = MOMENTUM * moving_var + (1.0 - MOMENTUM) * var
    return y3d.reshape(N, C, H, W), new_mm, new_mv


def batch_norm_pallas_2d(x, gamma, beta, moving_mean, moving_var,
                         *, tile_budget_bytes=None):
    """Training-mode BatchNorm forward for 2-D (N, C) inputs."""
    N, C = x.shape
    g = gamma.reshape(1, C)
    b = beta.reshape(1, C)

    isz = jnp.dtype(x.dtype).itemsize
    budget, vmem_limit = _vmem_budget()
    if tile_budget_bytes is not None:
        budget = tile_budget_bytes
    norm_dtype = _normalize_dtype(x.dtype)
    inv_n = 1.0 / float(N)

    bytes_per_elem = 4 * isz + 4
    cands = _lane_tile_candidates(C)       # features on the lane axis
    fitting = [t for t in cands if N * t * bytes_per_elem <= budget]
    tcc = max(fitting) if fitting else min(cands)
    # TODO(synk): a gigantic N for the 2-D path would additionally need an
    # N-reduction grid axis; typical FC batch sizes fit one feature slab.

    x_spec = pl.BlockSpec((N, tcc), lambda c: (0, c))
    p_spec = pl.BlockSpec((1, tcc), lambda c: (0, c))
    s_spec = pl.BlockSpec((2, tcc), lambda c: (0, c))

    y, stats = pl.pallas_call(
        functools.partial(_bn_train_2d_kernel, inv_n=inv_n,
                          norm_dtype=norm_dtype),
        grid=(C // tcc,),
        in_specs=[x_spec, p_spec, p_spec],
        out_specs=(x_spec, s_spec),
        out_shape=(
            jax.ShapeDtypeStruct((N, C), x.dtype),
            jax.ShapeDtypeStruct((2, C), jnp.float32),
        ),
        compiler_params=pltpu.CompilerParams(
            dimension_semantics=("parallel",),
            vmem_limit_bytes=vmem_limit,
        ),
        cost_estimate=pl.CostEstimate(
            flops=6 * N * C,
            transcendentals=C,
            bytes_accessed=2 * N * C * isz + 16 * C,
        ),
    )(x, g, b)

    mean = stats[0].reshape(1, C)
    var = stats[1].reshape(1, C)
    new_mm = MOMENTUM * moving_mean + (1.0 - MOMENTUM) * mean
    new_mv = MOMENTUM * moving_var + (1.0 - MOMENTUM) * var
    return y, new_mm, new_mv


class BatchNormPallas:
    """JAX/Pallas mirror of the PyTorch BatchNorm module (training forward)."""

    def __init__(self, num_features, num_dims=4):
        shape = (1, num_features) if num_dims == 2 else (1, num_features, 1, 1)
        self.num_dims = num_dims
        self.gamma = jnp.ones(shape, jnp.float32)
        self.beta = jnp.zeros(shape, jnp.float32)
        # Matches the reference module: moving stats start at zero (differs
        # from torch.nn.BatchNorm2d which starts running_var at one).
        self.moving_mean = jnp.zeros(shape, jnp.float32)
        self.moving_var = jnp.zeros(shape, jnp.float32)

    def __call__(self, x):
        if x.ndim == 2:
            y, self.moving_mean, self.moving_var = batch_norm_pallas_2d(
                x, self.gamma, self.beta, self.moving_mean, self.moving_var)
        else:
            y, self.moving_mean, self.moving_var = batch_norm_pallas_4d(
                x, self.gamma, self.beta, self.moving_mean, self.moving_var)
        return y


# --------------------------------------------------------------------------
# Pure-JAX references + self-test
# --------------------------------------------------------------------------

def _reference_4d(x, gamma, beta, mm, mv):
    mean = jnp.mean(x, axis=(0, 2, 3), keepdims=True)
    var = jnp.mean((x - mean) ** 2, axis=(0, 2, 3), keepdims=True)
    y = gamma * (x - mean) / jnp.sqrt(var + EPS) + beta
    return (y,
            MOMENTUM * mm + (1.0 - MOMENTUM) * mean,
            MOMENTUM * mv + (1.0 - MOMENTUM) * var)


def _reference_2d(x, gamma, beta, mm, mv):
    mean = jnp.mean(x, axis=0, keepdims=True)
    var = jnp.mean((x - mean) ** 2, axis=0, keepdims=True)
    y = gamma * (x - mean) / jnp.sqrt(var + EPS) + beta
    return (y,
            MOMENTUM * mm + (1.0 - MOMENTUM) * mean,
            MOMENTUM * mv + (1.0 - MOMENTUM) * var)


if __name__ == "__main__":
    key = jax.random.PRNGKey(0)
    k1, k2, k3 = jax.random.split(key, 3)

    # --- 4-D conv-feature path (fused single-pass kernel) ---
    N, C, H, W = 2, 4, 16, 16
    x = jax.random.normal(k1, (N, C, H, W), jnp.float32)
    bn = BatchNormPallas(num_features=C, num_dims=4)
    y = bn(x)
    y, mm, mv = jax.block_until_ready((y, bn.moving_mean, bn.moving_var))

    ones4 = jnp.ones((1, C, 1, 1))
    zeros4 = jnp.zeros((1, C, 1, 1))
    y_ref, mm_ref, mv_ref = _reference_4d(x, ones4, zeros4, zeros4, zeros4)
    assert jnp.allclose(y, y_ref, atol=1e-5, rtol=1e-5)
    assert jnp.allclose(mm, mm_ref, atol=1e-6, rtol=1e-6)
    assert jnp.allclose(mv, mv_ref, atol=1e-6, rtol=1e-6)

    # --- 4-D bounded-VMEM two-pass fallback (forced with a tiny tile budget
    #     and C=3, so no 8-divisible channel tile exists) ---
    N2, C2, H2, W2 = 2, 3, 16, 16
    x2 = jax.random.normal(k2, (N2, C2, H2, W2), jnp.float32)
    g2 = jnp.ones((1, C2, 1, 1))
    b2 = jnp.zeros((1, C2, 1, 1))
    z2 = jnp.zeros((1, C2, 1, 1))
    y2, mm2, mv2 = batch_norm_pallas_4d(
        x2, g2, b2, z2, z2, tile_budget_bytes=16 * 1024)
    y2, mm2, mv2 = jax.block_until_ready((y2, mm2, mv2))
    y2_ref, mm2_ref, mv2_ref = _reference_4d(x2, g2, b2, z2, z2)
    assert jnp.allclose(y2, y2_ref, atol=1e-5, rtol=1e-5)
    assert jnp.allclose(mm2, mm2_ref, atol=1e-6, rtol=1e-6)
    assert jnp.allclose(mv2, mv2_ref, atol=1e-6, rtol=1e-6)

    # --- 2-D fully-connected path ---
    Nf, Cf = 8, 32
    xf = jax.random.normal(k3, (Nf, Cf), jnp.float32)
    bn2 = BatchNormPallas(num_features=Cf, num_dims=2)
    yf = bn2(xf)
    yf, mmf, mvf = jax.block_until_ready((yf, bn2.moving_mean, bn2.moving_var))
    onesf = jnp.ones((1, Cf))
    zerosf = jnp.zeros((1, Cf))
    yf_ref, mmf_ref, mvf_ref = _reference_2d(xf, onesf, zerosf, zerosf, zerosf)
    assert jnp.allclose(yf, yf_ref, atol=1e-5, rtol=1e-5)
    assert jnp.allclose(mmf, mmf_ref, atol=1e-6, rtol=1e-6)
    assert jnp.allclose(mvf, mvf_ref, atol=1e-6, rtol=1e-6)

    print("KERNEL_OK")
</pallas_src>

<mosaic_0001>
module attributes {stable_mosaic.version = 11 : i64} {
  func.func @_bn_fused_kernel(%arg0: i32, %arg1: memref<2x4x256xf32, #tpu.memory_space<vmem>>, %arg2: memref<1x4x1xf32, #tpu.memory_space<vmem>>, %arg3: memref<1x4x1xf32, #tpu.memory_space<vmem>>, %arg4: memref<2x4x256xf32, #tpu.memory_space<vmem>>, %arg5: memref<2x4x1xf32, #tpu.memory_space<vmem>>) attributes {dimension_semantics = [#tpu.dimension_semantics<parallel>], iteration_bounds = array<i64: 1>, scalar_prefetch = 0 : i64, scratch_operands = 0 : i64, tpu.core_type = #tpu.core_type<tc>, window_params = [{transform_indices = @transform_0, window_bounds = array<i64: 2, 4, 256>}, {transform_indices = @transform_1, window_bounds = array<i64: 1, 4, 1>}, {transform_indices = @transform_2, window_bounds = array<i64: 1, 4, 1>}, {transform_indices = @transform_3, window_bounds = array<i64: 2, 4, 256>}, {transform_indices = @transform_4, window_bounds = array<i64: 2, 4, 1>}]} {
    %c0 = arith.constant 0 : index
    %c0_0 = arith.constant 0 : index
    %c0_1 = arith.constant 0 : index
    %0 = vector.load %arg1[%c0, %c0_0, %c0_1] : memref<2x4x256xf32, #tpu.memory_space<vmem>>, vector<2x4x256xf32>
    %cst = arith.constant dense<0.000000e+00> : vector<4xf32>
    %1 = vector.multi_reduction <add>, %0, %cst [0, 2] : vector<2x4x256xf32> to vector<4xf32>
    %2 = vector.shape_cast %1 : vector<4xf32> to vector<1x4x1xf32>
    %3 = arith.mulf %0, %0 : vector<2x4x256xf32>
    %cst_2 = arith.constant dense<0.000000e+00> : vector<4xf32>
    %4 = vector.multi_reduction <add>, %3, %cst_2 [0, 2] : vector<2x4x256xf32> to vector<4xf32>
    %5 = vector.shape_cast %4 : vector<4xf32> to vector<1x4x1xf32>
    %cst_3 = arith.constant 0.001953125 : f32
    %6 = vector.broadcast %cst_3 : f32 to vector<1x4x1xf32>
    %7 = arith.mulf %2, %6 : vector<1x4x1xf32>
    %cst_4 = arith.constant 0.001953125 : f32
    %8 = vector.broadcast %cst_4 : f32 to vector<1x4x1xf32>
    %9 = arith.mulf %5, %8 : vector<1x4x1xf32>
    %10 = arith.mulf %7, %7 : vector<1x4x1xf32>
    %11 = arith.subf %9, %10 : vector<1x4x1xf32>
    %cst_5 = arith.constant 0.000000e+00 : f32
    %12 = vector.broadcast %cst_5 : f32 to vector<1x4x1xf32>
    %13 = arith.maximumf %11, %12 : vector<1x4x1xf32>
    %cst_6 = arith.constant 9.99999974E-6 : f32
    %14 = vector.broadcast %cst_6 : f32 to vector<1x4x1xf32>
    %15 = arith.addf %13, %14 : vector<1x4x1xf32>
    %16 = math.rsqrt %15 : vector<1x4x1xf32>
    %c0_7 = arith.constant 0 : index
    %c0_8 = arith.constant 0 : index
    %c0_9 = arith.constant 0 : index
    %17 = vector.load %arg2[%c0_7, %c0_8, %c0_9] : memref<1x4x1xf32, #tpu.memory_space<vmem>>, vector<1x4x1xf32>
    %18 = arith.mulf %17, %16 : vector<1x4x1xf32>
    %c0_10 = arith.constant 0 : index
    %c0_11 = arith.constant 0 : index
    %c0_12 = arith.constant 0 : index
    %19 = vector.load %arg3[%c0_10, %c0_11, %c0_12] : memref<1x4x1xf32, #tpu.memory_space<vmem>>, vector<1x4x1xf32>
    %20 = arith.mulf %18, %7 : vector<1x4x1xf32>
    %21 = arith.subf %19, %20 : vector<1x4x1xf32>
    %22 = vector.broadcast %18 : vector<1x4x1xf32> to vector<2x4x256xf32>
    %23 = arith.mulf %0, %22 : vector<2x4x256xf32>
    %24 = vector.broadcast %21 : vector<1x4x1xf32> to vector<2x4x256xf32>
    %25 = arith.addf %23, %24 : vector<2x4x256xf32>
    %c0_13 = arith.constant 0 : index
    %c0_14 = arith.constant 0 : index
    %c0_15 = arith.constant 0 : index
    %26 = vector.load %arg4[%c0_13, %c0_14, %c0_15] : memref<2x4x256xf32, #tpu.memory_space<vmem>>, vector<2x4x256xf32>
    tpu.vector_store %arg4[%c0_13, %c0_14, %c0_15], %25 {strides = array<i32>} : memref<2x4x256xf32, #tpu.memory_space<vmem>>, vector<2x4x256xf32>,
    %27 = tpu.concatenate %7, %13 in 0 : vector<1x4x1xf32>, vector<1x4x1xf32> -> vector<2x4x1xf32>
    %c0_16 = arith.constant 0 : index
    %c0_17 = arith.constant 0 : index
    %c0_18 = arith.constant 0 : index
    %28 = vector.load %arg5[%c0_16, %c0_17, %c0_18] : memref<2x4x1xf32, #tpu.memory_space<vmem>>, vector<2x4x1xf32>
    tpu.vector_store %arg5[%c0_16, %c0_17, %c0_18], %27 {strides = array<i32>} : memref<2x4x1xf32, #tpu.memory_space<vmem>>, vector<2x4x1xf32>,
    return
  }
  func.func @transform_0(%arg0: i32) -> (i32, i32, i32) {
    %c0_i32 = arith.constant 0 : i32
    %c0_i32_0 = arith.constant 0 : i32
    %c0_i32_1 = arith.constant 0 : i32
    return %c0_i32, %arg0, %c0_i32_0 : i32, i32, i32
  }
  func.func @transform_1(%arg0: i32) -> (i32, i32, i32) {
    %c0_i32 = arith.constant 0 : i32
    %c0_i32_0 = arith.constant 0 : i32
    %c0_i32_1 = arith.constant 0 : i32
    return %c0_i32, %arg0, %c0_i32_0 : i32, i32, i32
  }
  func.func @transform_2(%arg0: i32) -> (i32, i32, i32) {
    %c0_i32 = arith.constant 0 : i32
    %c0_i32_0 = arith.constant 0 : i32
    %c0_i32_1 = arith.constant 0 : i32
    return %c0_i32, %arg0, %c0_i32_0 : i32, i32, i32
  }
  func.func @transform_3(%arg0: i32) -> (i32, i32, i32) {
    %c0_i32 = arith.constant 0 : i32
    %c0_i32_0 = arith.constant 0 : i32
    %c0_i32_1 = arith.constant 0 : i32
    return %c0_i32, %arg0, %c0_i32_0 : i32, i32, i32
  }
  func.func @transform_4(%arg0: i32) -> (i32, i32, i32) {
    %c0_i32 = arith.constant 0 : i32
    %c0_i32_0 = arith.constant 0 : i32
    %c0_i32_1 = arith.constant 0 : i32
    return %c0_i32, %arg0, %c0_i32_0 : i32, i32, i32
  }
}

</mosaic_0001>

<llo_original>
// kernel: tpu_custom_call.1
$region0: #{tpu_custom_call.1}
  #allocation0 [shape = 'u32[]', space=smem, size = 0x4, offset = 0x4, fixed_abs, tag = 'smem constant byte address 0x4 - core index']
  #allocation1 [shape = 'u32[72,128]{1,0:T(1,128)}', space=vmem, size = 0x9000, scoped, tag = 'internal scratch']
  %s0 = inlined_call_operand.hbm [shape: f32[2,4,256], index: 0, kind: input, shape index: {}]
  %s1 = inlined_call_operand.vmem [shape: f32[1,4,1], index: 1, kind: input, shape index: {}]
  %s2 = inlined_call_operand.vmem [shape: f32[1,4,1], index: 2, kind: input, shape index: {}]
  %s3 = inlined_call_operand.hbm [shape: f32[2,4,256], index: 3, kind: output, shape index: {0}]
  %s4 = inlined_call_operand.vmem [shape: f32[2,4,1], index: 4, kind: output, shape index: {1}]
  %5 = xla_tuple %s3, %s4
  %s6 = sld [smem:[#allocation0]]
  $region34: #{tpu_custom_call.1} parent=0
    _
  %s8 = ssub.s32 1, %s6
  %s9 = scalar_select 0, %s8, %s6
  $region1: #{tpu_custom_call.1} parent=0
    #allocation2 [shape = 'u8[8192]{0}', space=vmem, size = 0x2000, scoped, tag = 'input window, operand 0, single buffered']
    #allocation3 [shape = 's32[1]{0}', space=sflag, size = 0x4, scoped, tag = 'scoped memory for tpu_custom_call.1']
    #allocation4 [shape = 's32[1]{0}', space=sflag, size = 0x4, scoped, tag = 'scoped memory for tpu_custom_call.1']
    #allocation5 [shape = 'u8[8192]{0}', space=vmem, size = 0x2000, scoped, tag = 'output window, operand 0, single buffered']
    %10 = vsyncpa [#allocation3], 0
    %11 = vsyncpa [#allocation4], 0
    // Predicated region
    $region2: #{tpu_custom_call.1} parent=1 // pred_check
      _
    $region3: #{tpu_custom_call.1} parent=1 // pred_check_branch
      %13 = sbr.rel (0) target = $region5
    $region4: #{tpu_custom_call.1} parent=1 // pred_region
      %15 = vsyncadd [#allocation3], 0
      %s16 = sshll.u32 %s0, 4
      %s17 = int_to_ptr.hbm [resolvable:$true] %s16
      %s18 = sshll.u32 [#allocation2], 4
      %s19 = int_to_ptr.vmem [resolvable:$true] %s18
      %24 = dma.hbm_to_vmem [thread:$0]  %s17, 256, %s19, [#allocation3], 128, 128, 8
    $region5: #{tpu_custom_call.1} parent=1 // pred_fallthru
      _
    // Predicated region
    $region6: #{tpu_custom_call.1} parent=1 // pred_check
      _
    $region7: #{tpu_custom_call.1} parent=1 // pred_check_branch
      %26 = sbr.rel (0) target = $region9
    $region8: #{tpu_custom_call.1} parent=1 // pred_region
      _
    $region9: #{tpu_custom_call.1} parent=1 // pred_fallthru
      _
    // Predicated region
    $region10: #{tpu_custom_call.1} parent=1 // pred_check
      _
    $region11: #{tpu_custom_call.1} parent=1 // pred_check_branch
      %28 = sbr.rel (0) target = $region13
    $region12: #{tpu_custom_call.1} parent=1 // pred_region
      _
    $region13: #{tpu_custom_call.1} parent=1 // pred_fallthru
      _
    // Predicated region
    $region14: #{tpu_custom_call.1} parent=1 // pred_check
      _
    $region15: #{tpu_custom_call.1} parent=1 // pred_check_branch
      %30 = sbr.rel (0) target = $region17
    $region16: #{tpu_custom_call.1} parent=1 // pred_region
      %32 = dma.done [#allocation3], 256
    $region17: #{tpu_custom_call.1} parent=1 // pred_fallthru
      _
    %v33 = vld [vmem:[#allocation2] sm:$0xff]
    %v34 = vld [vmem:[#allocation2 + $0x8] sm:$0xff]
    %37 = vst [vmem:[#allocation1] ss:$2 sm:$0xff] %v33
    %v38 = vld.sshfl [vmem:[#allocation1] sm:$0xff pattern:$0x75316420]
    %v39 = vld.sshfl [vmem:[#allocation1 + $0x8] sm:$0xff pattern:$0x75316420]
    %s40 = scalar_lea.vmem [#allocation1], 16
    %41 = vst [vmem:[%s40] ss:$2 sm:$0xff] %v34
    %v42 = vld.sshfl [vmem:[#allocation1 + $0x10] sm:$0xff pattern:$0x75316420]
    %v43 = vld.sshfl [vmem:[#allocation1 + $0x18] sm:$0xff pattern:$0x75316420]
    %vm48 = vcmask 1043456
    %v49 = vsel %vm48, %v38, 0.0
    %v50 = vsel %vm48, %v39, 0.0
    %v51 = vadd.f32 %v49, %v50
    %v52 = vsel %vm48, %v42, 0.0
    %v53 = vadd.f32 %v51, %v52
    %v54 = vsel %vm48, %v43, 0.0
    %v55 = vadd.f32 %v53, %v54
    %56 = vadd.xlane.f32.xlu0 %v55
    %v57 = vpop.xlane.xlu0 %56
    %v58 = vmul.f32 %v33, %v33
    %v59 = vmul.f32 %v34, %v34
    %62 = vst [vmem:[#allocation1] ss:$2 sm:$0xff] %v58
    %v63 = vld.sshfl [vmem:[#allocation1] sm:$0xff pattern:$0x75316420]
    %v64 = vld.sshfl [vmem:[#allocation1 + $0x8] sm:$0xff pattern:$0x75316420]
    %s65 = scalar_lea.vmem [#allocation1], 16
    %66 = vst [vmem:[%s65] ss:$2 sm:$0xff] %v59
    %v67 = vld.sshfl [vmem:[#allocation1 + $0x10] sm:$0xff pattern:$0x75316420]
    %v68 = vld.sshfl [vmem:[#allocation1 + $0x18] sm:$0xff pattern:$0x75316420]
    %v73 = vsel %vm48, %v63, 0.0
    %v74 = vsel %vm48, %v64, 0.0
    %v75 = vadd.f32 %v73, %v74
    %v76 = vsel %vm48, %v67, 0.0
    %v77 = vadd.f32 %v75, %v76
    %v78 = vsel %vm48, %v68, 0.0
    %v79 = vadd.f32 %v77, %v78
    %80 = vadd.xlane.f32.xlu0 %v79
    %v81 = vpop.xlane.xlu0 %80
    %v82 = vmul.f32 %v57, 0.001953125
    %v83 = vmul.f32 %v81, 0.001953125
    %v84 = vmul.f32 %v82, %v82
    %v85 = vsub.f32 %v83, %v84
    %v86 = vmax.f32 %v85, 0.0
    %v87 = vadd.f32 %v86, 1e-05
    %v88 = vrsqrt.pop %v87
    %v89 = vmul.f32 %v88, %v87
    %v90 = vmul.f32 %v89, %v88
    %v91 = vmul.f32 0.5, %v90
    %v92 = vsub.f32 1.5, %v91
    %v93 = vmul.f32 %v88, %v92
    %vm94 = vweird.f32 %v87
    %vm95 = vweird.f32 %v88
    %vm96 = vmor %vm94, %vm95
    %v97 = vsel %vm96, %v88, %v93
    %v98 = vld [vmem:[%s1] sm:$0xf]
    %v99 = vmul.f32 %v98, %v97
    %v100 = vld [vmem:[%s2] sm:$0xf]
    %v101 = vmul.f32 %v99, %v82
    %v102 = vsub.f32 %v100, %v101
    %104 = vset.pattern.permute.xlu0 0
    %105 = vperm.xlu0 %104, %v99
    %v106 = vpop.permute.xlu0 %105
    %v108 = vunpack.c.l.s4 839922192
    %v109 = vunpack.c.0.s8 %v108
    %v110 = vperm.slane %v106, %v109
    %v112 = vmul.f32 %v33, %v110
    %v113 = vmul.f32 %v34, %v110
    %115 = vset.pattern.permute.xlu0 0
    %116 = vperm.xlu0 %115, %v102
    %v117 = vpop.permute.xlu0 %116
    %v119 = vunpack.c.l.s4 839922192
    %v120 = vunpack.c.0.s8 %v119
    %v121 = vperm.slane %v117, %v120
    %v123 = vadd.f32 %v112, %v121
    %v124 = vadd.f32 %v113, %v121
    %125 = vst [vmem:[#allocation5] sm:$0xff] %v123
    %126 = vst [vmem:[#allocation5 + $0x8] sm:$0xff] %v124
    %vm127 = vcmask 3072
    %128 = vst.msk [vmem:[%s4] sm:$0xf] %vm127, %v82
    %129 = vst.msk [vmem:[%s4 + $0x4] sm:$0xf] %vm127, %v86
    // Predicated region
    $region18: #{tpu_custom_call.1} parent=1 // pred_check
      _
    $region19: #{tpu_custom_call.1} parent=1 // pred_check_branch
      %131 = sbr.rel (0) target = $region21
    $region20: #{tpu_custom_call.1} parent=1 // pred_region
      %133 = vsyncadd [#allocation4], 0
      %s134 = sshll.u32 [#allocation5], 4
      %s135 = int_to_ptr.vmem [resolvable:$true] %s134
      %s136 = sshll.u32 %s3, 4
      %s137 = int_to_ptr.hbm [resolvable:$true] %s136
      %142 = dma.vmem_to_hbm [thread:$0]  %s135, 256, %s137, [#allocation4], 128, 128, 8
    $region21: #{tpu_custom_call.1} parent=1 // pred_fallthru
      _
    // Predicated region
    $region22: #{tpu_custom_call.1} parent=1 // pred_check
      _
    $region23: #{tpu_custom_call.1} parent=1 // pred_check_branch
      %144 = sbr.rel (0) target = $region25
    $region24: #{tpu_custom_call.1} parent=1 // pred_region
      _
    $region25: #{tpu_custom_call.1} parent=1 // pred_fallthru
      _
    // Predicated region
    $region26: #{tpu_custom_call.1} parent=1 // pred_check
      _
    $region27: #{tpu_custom_call.1} parent=1 // pred_check_branch
      %146 = sbr.rel (0) target = $region29
    $region28: #{tpu_custom_call.1} parent=1 // pred_region
      %148 = dma.done [#allocation4], 256
    $region29: #{tpu_custom_call.1} parent=1 // pred_fallthru
      _
    // Predicated region
    $region30: #{tpu_custom_call.1} parent=1 // pred_check
      _
    $region31: #{tpu_custom_call.1} parent=1 // pred_check_branch
      %150 = sbr.rel (0) target = $region33
    $region32: #{tpu_custom_call.1} parent=1 // pred_region
      _
    $region33: #{tpu_custom_call.1} parent=1 // pred_fallthru
      _
    %151 = vsyncpa [#allocation3], 1
    %152 = vsyncpa [#allocation4], 1

</llo_original>
